<compile_context>
chip_gen: v5e
topology: v5e:2x2
jax: 0.10.0
libtpu: 0.0.40
codegen_flags: <defaults>
</compile_context>

<pallas_src>
import functools

import jax
import jax.numpy as jnp
from jax.experimental import pallas as pl
from jax.experimental.pallas import tpu as pltpu

EMB_DIM = 128      # Embeding second conv out_channels (fixed by the module)
BN_EPS = 1e-5


def _stam_embed_kernel(x_ref, w1_ref, b1_ref, w2_ref, b2_ref, vect_ref, emb_ref):
    """F frames per grid step, NCHW layout (channels in sublanes, spatial in lanes).

    x_ref    : (F, C, HW)      input frames
    w1_ref   : (MID, C)        conv1 1x1 weight (BN1 scale folded in)
    b1_ref   : (1, MID, 1)     folded BN1 bias (f32)
    w2_ref   : (128, MID)      conv2 1x1 weight (BN2 scale folded in)
    b2_ref   : (1, 128, 1)     folded BN2 bias (f32)
    vect_ref : (F, C, 1)       global-average-pooled feature vectors (f32)
    emb_ref  : (F, 128, HW)    embedded feature maps (caller layout, no transpose)
    """
    x = x_ref[...]                                                      # (F, C, HW)
    f = x.shape[0]

    # AdaptiveAvgPool2d((1,1)) == mean over the spatial (lane) axis, f32 accumulate.
    vect_ref[...] = jnp.mean(x.astype(jnp.float32), axis=-1, keepdims=True)

    # Conv1x1 (BN folded into weight) -> bias -> ReLU, batched over frames.
    w1 = jnp.broadcast_to(w1_ref[...], (f,) + tuple(w1_ref.shape))      # (F, MID, C)
    h1 = jnp.einsum("fmc,fcs->fms", w1, x, preferred_element_type=jnp.float32)
    h1 = jnp.maximum(h1 + b1_ref[...], 0.0).astype(x.dtype)             # (F, MID, HW)

    w2 = jnp.broadcast_to(w2_ref[...], (f,) + tuple(w2_ref.shape))      # (F, 128, MID)
    h2 = jnp.einsum("fom,fms->fos", w2, h1, preferred_element_type=jnp.float32)
    emb_ref[...] = jnp.maximum(h2 + b2_ref[...], 0.0).astype(emb_ref.dtype)


def fold_bn(w, bn, eps=BN_EPS):
    """Fold eval-mode BatchNorm into a (Cout, Cin) 1x1-conv weight.

    Returns (w_eff, b_eff) with y = w_eff @ x + b_eff == BN(conv(x)).
    Works for arbitrary trained gamma/beta/running stats.
    """
    scale = bn["gamma"] / jnp.sqrt(bn["var"] + eps)
    return w * scale[:, None], bn["beta"] - bn["mean"] * scale


def _choose_frames_per_block(bt, c, hw, in_itemsize, out_itemsize,
                             vmem_budget=4 << 20):
    """Largest divisor of bt whose double-buffered block footprint fits the budget,
    preferring to keep >= 4 grid steps (megacore / pipeline depth)."""
    per_frame = hw * (c * (in_itemsize + 4) + EMB_DIM * (out_itemsize + 4))
    divisors = [f for f in range(1, bt + 1) if bt % f == 0]
    for min_steps in (4, 2, 1):
        fits = [f for f in divisors
                if 2 * f * per_frame <= vmem_budget and bt // f >= min_steps]
        if fits:
            return max(fits)
    return 1


@functools.partial(jax.jit, static_argnames=("frames_per_block",))
def stam_forward(feat_map, params, *, frames_per_block=None):
    """feat_map: (b, t, c, h, w). Returns (feat_vect (b,t,c) f32,
    embed_feat (b,t,128,h,w) in feat_map.dtype)."""
    b, t, c, h, w = feat_map.shape
    bt, hw = b * t, h * w
    mid = params["w1"].shape[0]

    x = feat_map.reshape(bt, c, hw)        # contiguous reshape only -- no transpose
    dt = x.dtype
    emb_dtype = dt

    # Fold eval-mode BN into the 1x1 conv weights; keep biases in f32.
    w1_eff, b1 = fold_bn(params["w1"], params["bn1"])
    w2_eff, b2 = fold_bn(params["w2"], params["bn2"])
    w1_eff = w1_eff.astype(dt)                                  # (MID, C)
    w2_eff = w2_eff.astype(dt)                                  # (128, MID)
    b1 = b1.reshape(1, mid, 1).astype(jnp.float32)
    b2 = b2.reshape(1, EMB_DIM, 1).astype(jnp.float32)

    itemsize_in = jnp.dtype(dt).itemsize
    itemsize_out = jnp.dtype(emb_dtype).itemsize
    if frames_per_block is None:
        frames_per_block = _choose_frames_per_block(bt, c, hw, itemsize_in,
                                                    itemsize_out)
    fpb = frames_per_block
    assert bt % fpb == 0, "frames_per_block must divide b*t"

    grid_spec = pltpu.PrefetchScalarGridSpec(
        num_scalar_prefetch=0,
        grid=(bt // fpb,),
        in_specs=[
            pl.BlockSpec((fpb, c, hw), lambda i: (i, 0, 0)),
            pl.BlockSpec((mid, c), lambda i: (0, 0)),
            pl.BlockSpec((1, mid, 1), lambda i: (0, 0, 0)),
            pl.BlockSpec((EMB_DIM, mid), lambda i: (0, 0)),
            pl.BlockSpec((1, EMB_DIM, 1), lambda i: (0, 0, 0)),
        ],
        out_specs=[
            pl.BlockSpec((fpb, c, 1), lambda i: (i, 0, 0)),
            pl.BlockSpec((fpb, EMB_DIM, hw), lambda i: (i, 0, 0)),
        ],
    )

    cost = pl.CostEstimate(
        flops=2 * bt * hw * (c * mid + mid * EMB_DIM),
        transcendentals=0,
        bytes_accessed=(bt * c * hw * itemsize_in                    # input read
                        + (mid * c + EMB_DIM * mid) * itemsize_in    # weights
                        + (mid + EMB_DIM) * 4                        # biases
                        + bt * EMB_DIM * hw * itemsize_out           # emb write
                        + bt * c * 4),                               # vect write
    )

    vect, emb = pl.pallas_call(
        _stam_embed_kernel,
        grid_spec=grid_spec,
        out_shape=(
            jax.ShapeDtypeStruct((bt, c, 1), jnp.float32),
            jax.ShapeDtypeStruct((bt, EMB_DIM, hw), emb_dtype),
        ),
        compiler_params=pltpu.CompilerParams(
            dimension_semantics=("parallel",)),
        cost_estimate=cost,
    )(x, w1_eff, b1, w2_eff, b2)

    feat_vect = vect.reshape(b, t, c)                 # free reshape
    embed_feat = emb.reshape(b, t, EMB_DIM, h, w)     # free reshape (NCHW kept)

    # TODO(synk): TRA / SRA / SLD sub-modules are not defined in the provided
    # source, so gap_feat_map0 / gap_feat_map / ATT(...) cannot be implemented.
    return feat_vect, embed_feat


def init_stam_params(key, inplanes, mid_planes):
    """Matches weights_init_kaiming: kaiming_normal_(fan_in) on both 1x1 convs
    (weight stored (Cout, Cin) like PyTorch conv weight[:, :, 0, 0]); BN gamma=1,
    beta=0, eval-mode running stats mean=0 / var=1."""
    k1, k2 = jax.random.split(key, 2)
    w1 = jax.random.normal(k1, (mid_planes, inplanes), jnp.float32) * jnp.sqrt(2.0 / inplanes)
    w2 = jax.random.normal(k2, (EMB_DIM, mid_planes), jnp.float32) * jnp.sqrt(2.0 / mid_planes)

    def bn(n):
        return {"gamma": jnp.ones((n,), jnp.float32),
                "beta": jnp.zeros((n,), jnp.float32),
                "mean": jnp.zeros((n,), jnp.float32),
                "var": jnp.ones((n,), jnp.float32)}

    # NOTE: self.conv_block is defined in __init__ but never used in forward().
    return {"w1": w1, "bn1": bn(mid_planes), "w2": w2, "bn2": bn(EMB_DIM)}


if __name__ == "__main__":
    # Small shapes consistent with the module: (b, t, c, h, w)
    b, t, c, h, w = 2, 4, 16, 8, 8
    mid_planes = 32

    key = jax.random.PRNGKey(0)
    k_x, k_p = jax.random.split(key)
    # bf16 activations: halves HBM traffic for this memory-bound kernel.
    feat_map = jax.random.normal(k_x, (b, t, c, h, w), jnp.float32).astype(jnp.bfloat16)
    params = init_stam_params(k_p, inplanes=c, mid_planes=mid_planes)

    feat_vect, embed_feat = stam_forward(feat_map, params)
    jax.block_until_ready((feat_vect, embed_feat))

    assert feat_vect.shape == (b, t, c)
    assert feat_vect.dtype == jnp.float32
    assert embed_feat.shape == (b, t, EMB_DIM, h, w)
    assert embed_feat.dtype == feat_map.dtype

    # Plain-JAX reference with identical folded-BN / dtype semantics.
    bt, hw = b * t, h * w
    xr = feat_map.reshape(bt, c, hw)
    ref_vect = jnp.mean(xr.astype(jnp.float32), axis=-1).reshape(b, t, c)
    w1_eff, b1v = fold_bn(params["w1"], params["bn1"])
    w2_eff, b2v = fold_bn(params["w2"], params["bn2"])
    r1 = jnp.einsum("mc,fcs->fms", w1_eff.astype(xr.dtype), xr,
                    preferred_element_type=jnp.float32)
    r1 = jnp.maximum(r1 + b1v[None, :, None], 0.0).astype(xr.dtype)
    r2 = jnp.einsum("om,fms->fos", w2_eff.astype(xr.dtype), r1,
                    preferred_element_type=jnp.float32)
    ref_emb = jnp.maximum(r2 + b2v[None, :, None], 0.0).astype(xr.dtype)
    ref_emb = ref_emb.reshape(b, t, EMB_DIM, h, w)

    assert jnp.allclose(feat_vect, ref_vect, atol=1e-4)
    assert jnp.allclose(embed_feat.astype(jnp.float32), ref_emb.astype(jnp.float32),
                        atol=3e-2, rtol=3e-2)

    print("KERNEL_OK")
</pallas_src>

<mosaic_0001>
module attributes {stable_mosaic.version = 11 : i64} {
  func.func @_stam_embed_kernel(%arg0: i32, %arg1: memref<2x16x64xbf16, #tpu.memory_space<vmem>>, %arg2: memref<32x16xbf16, #tpu.memory_space<vmem>>, %arg3: memref<1x32x1xf32, #tpu.memory_space<vmem>>, %arg4: memref<128x32xbf16, #tpu.memory_space<vmem>>, %arg5: memref<1x128x1xf32, #tpu.memory_space<vmem>>, %arg6: memref<2x16x1xf32, #tpu.memory_space<vmem>>, %arg7: memref<2x128x64xbf16, #tpu.memory_space<vmem>>) attributes {dimension_semantics = [#tpu.dimension_semantics<parallel>], iteration_bounds = array<i64: 4>, scalar_prefetch = 0 : i64, scratch_operands = 0 : i64, tpu.core_type = #tpu.core_type<tc>, window_params = [{transform_indices = @transform_0, window_bounds = array<i64: 2, 16, 64>}, {pipeline_mode = #tpu.pipeline_mode<synchronous>, transform_indices = @transform_1, window_bounds = array<i64: 32, 16>}, {pipeline_mode = #tpu.pipeline_mode<synchronous>, transform_indices = @transform_2, window_bounds = array<i64: 1, 32, 1>}, {pipeline_mode = #tpu.pipeline_mode<synchronous>, transform_indices = @transform_3, window_bounds = array<i64: 128, 32>}, {pipeline_mode = #tpu.pipeline_mode<synchronous>, transform_indices = @transform_4, window_bounds = array<i64: 1, 128, 1>}, {transform_indices = @transform_5, window_bounds = array<i64: 2, 16, 1>}, {transform_indices = @transform_6, window_bounds = array<i64: 2, 128, 64>}]} {
    %c0 = arith.constant 0 : index
    %c0_0 = arith.constant 0 : index
    %c0_1 = arith.constant 0 : index
    %0 = vector.load %arg1[%c0, %c0_0, %c0_1] : memref<2x16x64xbf16, #tpu.memory_space<vmem>>, vector<2x16x64xbf16>
    %1 = arith.extf %0 : vector<2x16x64xbf16> to vector<2x16x64xf32>
    %cst = arith.constant dense<0.000000e+00> : vector<2x16xf32>
    %2 = vector.multi_reduction <add>, %1, %cst [2] : vector<2x16x64xf32> to vector<2x16xf32>
    %3 = vector.shape_cast %2 : vector<2x16xf32> to vector<2x16x1xf32>
    %cst_2 = arith.constant 6.400000e+01 : f32
    %4 = vector.broadcast %cst_2 : f32 to vector<2x16x1xf32>
    %5 = arith.divf %3, %4 : vector<2x16x1xf32>
    %c0_3 = arith.constant 0 : index
    %c0_4 = arith.constant 0 : index
    %c0_5 = arith.constant 0 : index
    %6 = vector.load %arg6[%c0_3, %c0_4, %c0_5] : memref<2x16x1xf32, #tpu.memory_space<vmem>>, vector<2x16x1xf32>
    tpu.vector_store %arg6[%c0_3, %c0_4, %c0_5], %5 {strides = array<i32>} : memref<2x16x1xf32, #tpu.memory_space<vmem>>, vector<2x16x1xf32>,
    %c0_6 = arith.constant 0 : index
    %c0_7 = arith.constant 0 : index
    %7 = vector.load %arg2[%c0_6, %c0_7] : memref<32x16xbf16, #tpu.memory_space<vmem>>, vector<32x16xbf16>
    %8 = vector.shape_cast %7 : vector<32x16xbf16> to vector<1x32x16xbf16>
    %9 = vector.broadcast %8 : vector<1x32x16xbf16> to vector<2x32x16xbf16>
    "tpu.trace_start"() <{level = 10 : i32, message = "fmc,fcs->fms"}> : () -> ()
    %cst_8 = arith.constant dense<0.000000e+00> : vector<2x32x64xf32>
    %10 = tpu.matmul %9, %0, %cst_8 {dimension_numbers = #tpu.dot_dimension_numbers<[2], [1], [1], [2], [0, 0, 0, 1, 1, 2], [0], [0]>} : vector<2x32x16xbf16>, vector<2x16x64xbf16>, vector<2x32x64xf32> -> vector<2x32x64xf32>
    "tpu.trace_stop"() : () -> ()
    %c0_9 = arith.constant 0 : index
    %c0_10 = arith.constant 0 : index
    %c0_11 = arith.constant 0 : index
    %11 = vector.load %arg3[%c0_9, %c0_10, %c0_11] : memref<1x32x1xf32, #tpu.memory_space<vmem>>, vector<1x32x1xf32>
    %12 = vector.broadcast %11 : vector<1x32x1xf32> to vector<2x32x64xf32>
    %13 = arith.addf %10, %12 : vector<2x32x64xf32>
    %cst_12 = arith.constant 0.000000e+00 : f32
    %14 = vector.broadcast %cst_12 : f32 to vector<2x32x64xf32>
    %15 = arith.maximumf %13, %14 : vector<2x32x64xf32>
    %16 = arith.truncf %15 : vector<2x32x64xf32> to vector<2x32x64xbf16>
    %c0_13 = arith.constant 0 : index
    %c0_14 = arith.constant 0 : index
    %17 = vector.load %arg4[%c0_13, %c0_14] : memref<128x32xbf16, #tpu.memory_space<vmem>>, vector<128x32xbf16>
    %18 = vector.shape_cast %17 : vector<128x32xbf16> to vector<1x128x32xbf16>
    %19 = vector.broadcast %18 : vector<1x128x32xbf16> to vector<2x128x32xbf16>
    "tpu.trace_start"() <{level = 10 : i32, message = "fom,fms->fos"}> : () -> ()
    %cst_15 = arith.constant dense<0.000000e+00> : vector<2x128x64xf32>
    %20 = tpu.matmul %19, %16, %cst_15 {dimension_numbers = #tpu.dot_dimension_numbers<[2], [1], [1], [2], [0, 0, 0, 1, 1, 2], [0], [0]>} : vector<2x128x32xbf16>, vector<2x32x64xbf16>, vector<2x128x64xf32> -> vector<2x128x64xf32>
    "tpu.trace_stop"() : () -> ()
    %c0_16 = arith.constant 0 : index
    %c0_17 = arith.constant 0 : index
    %c0_18 = arith.constant 0 : index
    %21 = vector.load %arg5[%c0_16, %c0_17, %c0_18] : memref<1x128x1xf32, #tpu.memory_space<vmem>>, vector<1x128x1xf32>
    %22 = vector.broadcast %21 : vector<1x128x1xf32> to vector<2x128x64xf32>
    %23 = arith.addf %20, %22 : vector<2x128x64xf32>
    %cst_19 = arith.constant 0.000000e+00 : f32
    %24 = vector.broadcast %cst_19 : f32 to vector<2x128x64xf32>
    %25 = arith.maximumf %23, %24 : vector<2x128x64xf32>
    %26 = arith.truncf %25 : vector<2x128x64xf32> to vector<2x128x64xbf16>
    %c0_20 = arith.constant 0 : index
    %c0_21 = arith.constant 0 : index
    %c0_22 = arith.constant 0 : index
    %27 = vector.load %arg7[%c0_20, %c0_21, %c0_22] : memref<2x128x64xbf16, #tpu.memory_space<vmem>>, vector<2x128x64xbf16>
    tpu.vector_store %arg7[%c0_20, %c0_21, %c0_22], %26 {strides = array<i32>} : memref<2x128x64xbf16, #tpu.memory_space<vmem>>, vector<2x128x64xbf16>,
    return
  }
  func.func @transform_0(%arg0: i32) -> (i32, i32, i32) {
    %c0_i32 = arith.constant 0 : i32
    %c0_i32_0 = arith.constant 0 : i32
    %c0_i32_1 = arith.constant 0 : i32
    return %arg0, %c0_i32, %c0_i32_0 : i32, i32, i32
  }
  func.func @transform_1(%arg0: i32) -> (i32, i32) {
    %c0_i32 = arith.constant 0 : i32
    %c0_i32_0 = arith.constant 0 : i32
    %c0_i32_1 = arith.constant 0 : i32
    return %c0_i32, %c0_i32_0 : i32, i32
  }
  func.func @transform_2(%arg0: i32) -> (i32, i32, i32) {
    %c0_i32 = arith.constant 0 : i32
    %c0_i32_0 = arith.constant 0 : i32
    %c0_i32_1 = arith.constant 0 : i32
    %c0_i32_2 = arith.constant 0 : i32
    return %c0_i32, %c0_i32_0, %c0_i32_1 : i32, i32, i32
  }
  func.func @transform_3(%arg0: i32) -> (i32, i32) {
    %c0_i32 = arith.constant 0 : i32
    %c0_i32_0 = arith.constant 0 : i32
    %c0_i32_1 = arith.constant 0 : i32
    return %c0_i32, %c0_i32_0 : i32, i32
  }
  func.func @transform_4(%arg0: i32) -> (i32, i32, i32) {
    %c0_i32 = arith.constant 0 : i32
    %c0_i32_0 = arith.constant 0 : i32
    %c0_i32_1 = arith.constant 0 : i32
    %c0_i32_2 = arith.constant 0 : i32
    return %c0_i32, %c0_i32_0, %c0_i32_1 : i32, i32, i32
  }
  func.func @transform_5(%arg0: i32) -> (i32, i32, i32) {
    %c0_i32 = arith.constant 0 : i32
    %c0_i32_0 = arith.constant 0 : i32
    %c0_i32_1 = arith.constant 0 : i32
    return %arg0, %c0_i32, %c0_i32_0 : i32, i32, i32
  }
  func.func @transform_6(%arg0: i32) -> (i32, i32, i32) {
    %c0_i32 = arith.constant 0 : i32
    %c0_i32_0 = arith.constant 0 : i32
    %c0_i32_1 = arith.constant 0 : i32
    return %arg0, %c0_i32, %c0_i32_0 : i32, i32, i32
  }
}

</mosaic_0001>

<llo_original>
// kernel: stam_forward.1
$region0: #{stam_forward.1}
  #allocation0 [shape = 'u32[]', space=smem, size = 0x4, offset = 0x4, fixed_abs, tag = 'smem constant byte address 0x4 - core index']
  #allocation1 [shape = 'u32[72,128]{1,0:T(1,128)}', space=vmem, size = 0x9000, scoped, tag = 'internal scratch']
  %s0 = inlined_call_operand.vmem [shape: bf16[8,16,64], index: 0, kind: input, shape index: {}]
  %s1 = inlined_call_operand.vmem [shape: bf16[32,16], index: 1, kind: input, shape index: {}]
  %s2 = inlined_call_operand.vmem [shape: f32[1,32,1], index: 2, kind: input, shape index: {}]
  %s3 = inlined_call_operand.vmem [shape: bf16[128,32], index: 3, kind: input, shape index: {}]
  %s4 = inlined_call_operand.vmem [shape: f32[1,128,1], index: 4, kind: input, shape index: {}]
  %s5 = inlined_call_operand.vmem [shape: f32[8,16,1], index: 5, kind: output, shape index: {0}]
  %s6 = inlined_call_operand.vmem [shape: bf16[8,128,64], index: 6, kind: output, shape index: {1}]
  %7 = xla_tuple %s5, %s6
  %s8 = sld [smem:[#allocation0]]
  $region61: #{stam_forward.1} parent=0
    _
  %s10 = ssub.s32 1, %s8
  %s11 = scalar_select 0, %s10, %s8
  loop: start=0, step=1, limit=6
  $region2: #{stam_forward.1} parent=0 // loop_pre_header
    _
  $region3: #{stam_forward.1} parent=0 // loop_header
    %s13 = sphi 0, %s17
    %p14 = scmp.ge.s32.totalorder %s13, 6
    %s23 = sphi 0, %s25
    %s26 = sphi 0, %s23
    %s27 = sphi 0, %s26
    %s43 = sphi 0, %s27
    %s47 = sphi 0, %s47
    %s49 = sphi 0, %s47
    %s50 = sphi 0, %s49
    %s64 = sphi 0, %s50
    %s68 = sphi 0, %s68
    %s70 = sphi 0, %s68
    %s71 = sphi 0, %s70
    %s85 = sphi 0, %s71
    %s89 = sphi 0, %s89
    %s91 = sphi 0, %s89
    %s92 = sphi 0, %s91
    %s106 = sphi 0, %s92
    %s110 = sphi 0, %s110
    %s112 = sphi 0, %s110
    %s113 = sphi 0, %s112
    %s127 = sphi 0, %s113
    %s133 = sphi 0, %s135
    %s136 = sphi 0, %s133
    %s137 = sphi 0, %s136
    %s153 = sphi 0, %s137
    %s159 = sphi 0, %s161
    %s162 = sphi 0, %s159
    %s163 = sphi 0, %s162
    %s179 = sphi 0, %s163
  $region4: #{stam_forward.1} parent=0 // loop_header_branch
    %16 = sbr.rel (%p14) target = $region8
  $region5: #{stam_forward.1} parent=0 // loop_body
    %s18 = ssub.s32 %s13, 1
    %s19 = ssub.s32 %s13, 2
    %s20 = sadd.s32 %s13, 1
    %s21 = ssub.s32 %s13, %s20
    %p22 = scmp.eq.s32.totalorder %s21, 0
    %s24 = sadd.s32 %s23, 1
    %s25 = scalar_select %p22, %s23, %s24
    %p28 = pneg %p22
    %p29 = scmp.eq.s32.totalorder %s13, 3
    %p30 = por %p28, %p29
    %p31 = scmp.ne.s32.totalorder %s23, %s26
    %p32 = scmp.eq.s32.totalorder %s13, 0
    %p33 = por %p31, %p32
    %p34 = scmp.ne.s32.totalorder %s23, %s26
    %p35 = scmp.eq.s32.totalorder %s18, 3
    %p36 = por %p34, %p35
    %p37 = scmp.ne.s32.totalorder %s26, %s27
    %p38 = scmp.eq.s32.totalorder %s18, 0
    %p39 = por %p37, %p38
    %p40 = scmp.ne.s32.totalorder %s26, %s27
    %p41 = scmp.eq.s32.totalorder %s19, 3
    %p42 = por %p40, %p41
    %p44 = scmp.ne.s32.totalorder %s27, %s43
    %p45 = scmp.eq.s32.totalorder %s19, 0
    %p46 = por %p44, %p45
    %s48 = sadd.s32 %s47, 1
    %p51 = scmp.eq.s32.totalorder %s13, 3
    %p52 = scmp.ne.s32.totalorder %s47, %s49
    %p53 = scmp.eq.s32.totalorder %s13, 0
    %p54 = por %p52, %p53
    %p55 = scmp.ne.s32.totalorder %s47, %s49
    %p56 = scmp.eq.s32.totalorder %s18, 3
    %p57 = por %p55, %p56
    %p58 = scmp.ne.s32.totalorder %s49, %s50
    %p59 = scmp.eq.s32.totalorder %s18, 0
    %p60 = por %p58, %p59
    %p61 = scmp.ne.s32.totalorder %s49, %s50
    %p62 = scmp.eq.s32.totalorder %s19, 3
    %p63 = por %p61, %p62
    %p65 = scmp.ne.s32.totalorder %s50, %s64
    %p66 = scmp.eq.s32.totalorder %s19, 0
    %p67 = por %p65, %p66
    %s69 = sadd.s32 %s68, 1
    %p72 = scmp.eq.s32.totalorder %s13, 3
    %p73 = scmp.ne.s32.totalorder %s68, %s70
    %p74 = scmp.eq.s32.totalorder %s13, 0
    %p75 = por %p73, %p74
    %p76 = scmp.ne.s32.totalorder %s68, %s70
    %p77 = scmp.eq.s32.totalorder %s18, 3
    %p78 = por %p76, %p77
    %p79 = scmp.ne.s32.totalorder %s70, %s71
    %p80 = scmp.eq.s32.totalorder %s18, 0
    %p81 = por %p79, %p80
    %p82 = scmp.ne.s32.totalorder %s70, %s71
    %p83 = scmp.eq.s32.totalorder %s19, 3
    %p84 = por %p82, %p83
    %p86 = scmp.ne.s32.totalorder %s71, %s85
    %p87 = scmp.eq.s32.totalorder %s19, 0
    %p88 = por %p86, %p87
    %s90 = sadd.s32 %s89, 1
    %p93 = scmp.eq.s32.totalorder %s13, 3
    %p94 = scmp.ne.s32.totalorder %s89, %s91
    %p95 = scmp.eq.s32.totalorder %s13, 0
    %p96 = por %p94, %p95
    %p97 = scmp.ne.s32.totalorder %s89, %s91
    %p98 = scmp.eq.s32.totalorder %s18, 3
    %p99 = por %p97, %p98
    %p100 = scmp.ne.s32.totalorder %s91, %s92
    %p101 = scmp.eq.s32.totalorder %s18, 0
    %p102 = por %p100, %p101
    %p103 = scmp.ne.s32.totalorder %s91, %s92
    %p104 = scmp.eq.s32.totalorder %s19, 3
    %p105 = por %p103, %p104
    %p107 = scmp.ne.s32.totalorder %s92, %s106
    %p108 = scmp.eq.s32.totalorder %s19, 0
    %p109 = por %p107, %p108
    %s111 = sadd.s32 %s110, 1
    %p114 = scmp.eq.s32.totalorder %s13, 3
    %p115 = scmp.ne.s32.totalorder %s110, %s112
    %p116 = scmp.eq.s32.totalorder %s13, 0
    %p117 = por %p115, %p116
    %p118 = scmp.ne.s32.totalorder %s110, %s112
    %p119 = scmp.eq.s32.totalorder %s18, 3
    %p120 = por %p118, %p119
    %p121 = scmp.ne.s32.totalorder %s112, %s113
    %p122 = scmp.eq.s32.totalorder %s18, 0
    %p123 = por %p121, %p122
    %p124 = scmp.ne.s32.totalorder %s112, %s113
    %p125 = scmp.eq.s32.totalorder %s19, 3
    %p126 = por %p124, %p125
    %p128 = scmp.ne.s32.totalorder %s113, %s127
    %p129 = scmp.eq.s32.totalorder %s19, 0
    %p130 = por %p128, %p129
    %s131 = ssub.s32 %s13, %s20
    %p132 = scmp.eq.s32.totalorder %s131, 0
    %s134 = sadd.s32 %s133, 1
    %s135 = scalar_select %p132, %s133, %s134
    %p138 = pneg %p132
    %p139 = scmp.eq.s32.totalorder %s13, 3
    %p140 = por %p138, %p139
    %p141 = scmp.ne.s32.totalorder %s133, %s136
    %p142 = scmp.eq.s32.totalorder %s13, 0
    %p143 = por %p141, %p142
    %p144 = scmp.ne.s32.totalorder %s133, %s136
    %p145 = scmp.eq.s32.totalorder %s18, 3
    %p146 = por %p144, %p145
    %p147 = scmp.ne.s32.totalorder %s136, %s137
    %p148 = scmp.eq.s32.totalorder %s18, 0
    %p149 = por %p147, %p148
    %p150 = scmp.ne.s32.totalorder %s136, %s137
    %p151 = scmp.eq.s32.totalorder %s19, 3
    %p152 = por %p150, %p151
    %p154 = scmp.ne.s32.totalorder %s137, %s153
    %p155 = scmp.eq.s32.totalorder %s19, 0
    %p156 = por %p154, %p155
    %s157 = ssub.s32 %s13, %s20
    %p158 = scmp.eq.s32.totalorder %s157, 0
    %s160 = sadd.s32 %s159, 1
    %s161 = scalar_select %p158, %s159, %s160
    %p164 = pneg %p158
    %p165 = scmp.eq.s32.totalorder %s13, 3
    %p166 = por %p164, %p165
    %p167 = scmp.ne.s32.totalorder %s159, %s162
    %p168 = scmp.eq.s32.totalorder %s13, 0
    %p169 = por %p167, %p168
    %p170 = scmp.ne.s32.totalorder %s159, %s162
    %p171 = scmp.eq.s32.totalorder %s18, 3
    %p172 = por %p170, %p171
    %p173 = scmp.ne.s32.totalorder %s162, %s163
    %p174 = scmp.eq.s32.totalorder %s18, 0
    %p175 = por %p173, %p174
    %p176 = scmp.ne.s32.totalorder %s162, %s163
    %p177 = scmp.eq.s32.totalorder %s19, 3
    %p178 = por %p176, %p177
    %p180 = scmp.ne.s32.totalorder %s163, %s179
    %p181 = scmp.eq.s32.totalorder %s19, 0
    %p182 = por %p180, %p181
    %p183 = scmp.le.s32.totalorder 1, %s13
    %p184 = scmp.lt.s32.totalorder %s13, 5
    %p185 = pnand %p183, %p184
    %p186 = pneg %p185
    // Predicated region
    $region9: #{stam_forward.1} parent=5 // pred_check
      _
    $region10: #{stam_forward.1} parent=5 // pred_check_branch
      %188 = sbr.rel (%p185) target = $region12
    $region11: #{stam_forward.1} parent=5 // pred_region
      %s189 = ssub.s32 %s13, 1
      // Predicated region
      $region13: #{stam_forward.1} parent=11 // pred_check
        %p190 = pneg %p60
      $region14: #{stam_forward.1} parent=11 // pred_check_branch
        %192 = sbr.rel (%p190) target = $region16
      $region15: #{stam_forward.1} parent=11 // pred_region
        _
      $region16: #{stam_forward.1} parent=11 // pred_fallthru
        _
      // Predicated region
      $region17: #{stam_forward.1} parent=11 // pred_check
        %p193 = pneg %p81
      $region18: #{stam_forward.1} parent=11 // pred_check_branch
        %195 = sbr.rel (%p193) target = $region20
      $region19: #{stam_forward.1} parent=11 // pred_region
        _
      $region20: #{stam_forward.1} parent=11 // pred_fallthru
        _
      // Predicated region
      $region21: #{stam_forward.1} parent=11 // pred_check
        %p196 = pneg %p102
      $region22: #{stam_forward.1} parent=11 // pred_check_branch
        %198 = sbr.rel (%p196) target = $region24
      $region23: #{stam_forward.1} parent=11 // pred_region
        _
      $region24: #{stam_forward.1} parent=11 // pred_fallthru
        _
      // Predicated region
      $region25: #{stam_forward.1} parent=11 // pred_check
        %p199 = pneg %p123
      $region26: #{stam_forward.1} parent=11 // pred_check_branch
        %201 = sbr.rel (%p199) target = $region28
      $region27: #{stam_forward.1} parent=11 // pred_region
        _
      $region28: #{stam_forward.1} parent=11 // pred_fallthru
        _
    $region12: #{stam_forward.1} parent=5 // pred_fallthru
      _
    %p202 = scmp.lt.s32.totalorder %s13, 4
    // Predicated region
    $region29: #{stam_forward.1} parent=5 // pred_check
      %p203 = pneg %p202
    $region30: #{stam_forward.1} parent=5 // pred_check_branch
      %205 = sbr.rel (%p203) target = $region32
    $region31: #{stam_forward.1} parent=5 // pred_region
      // Predicated region
      $region33: #{stam_forward.1} parent=31 // pred_check
        %p206 = pneg %p33
      $region34: #{stam_forward.1} parent=31 // pred_check_branch
        %208 = sbr.rel (%p206) target = $region36
      $region35: #{stam_forward.1} parent=31 // pred_region
        %s209 = smul.u32 2, %s13
        %p210 = scmp.lt.s32.totalorder %s209, 7
        %s211 = scalar_select %p210, %s209, 7
        %s212 = smul.addr %s211, 2
        %s213 = smul.addr %s212, 4
        %s214 = scalar_lea.vmem %s0, %s213
        %s215 = smul.u32 2, %s13
      $region36: #{stam_forward.1} parent=31 // pred_fallthru
        _
    $region32: #{stam_forward.1} parent=5 // pred_fallthru
      _
    %p216 = scmp.le.s32.totalorder 1, %s13
    %p217 = scmp.lt.s32.totalorder %s13, 5
    %p218 = pnand %p216, %p217
    %p219 = pneg %p218
    // Predicated region
    $region37: #{stam_forward.1} parent=5 // pred_check
      _
    $region38: #{stam_forward.1} parent=5 // pred_check_branch
      %221 = sbr.rel (%p218) target = $region40
    $region39: #{stam_forward.1} parent=5 // pred_region
      %s222 = ssub.s32 %s13, 1
      %s223 = smul.u32 2, %s18
      %p224 = scmp.lt.s32.totalorder %s223, 7
      %s225 = scalar_select %p224, %s223, 7
      %s226 = smul.addr %s225, 2
      %s227 = smul.addr %s226, 4
      %s228 = scalar_lea.vmem %s0, %s227
      %p229 = pneg %p39
      %p230 = pneg %p36
      %p231 = pneg %p60
      %p232 = pneg %p57
      %p233 = pneg %p81
      %p234 = pneg %p78
      %p235 = pneg %p102
      %p236 = pneg %p99
      %p237 = pneg %p123
      %p238 = pneg %p120
      %p239 = pneg %p149
      %p240 = pneg %p146
      %s241 = smul.u32 2, %s18
      %p242 = scmp.lt.s32.totalorder %s241, 7
      %s243 = scalar_select %p242, %s241, 7
      %s244 = smul.addr %s243, 2
      %s245 = smul.addr %s244, 8
      %s246 = scalar_lea.vmem %s5, %s245
      %p247 = pneg %p175
      %p248 = pneg %p172
      %s249 = smul.u32 2, %s18
      %p250 = scmp.lt.s32.totalorder %s249, 7
      %s251 = scalar_select %p250, %s249, 7
      %s252 = smul.addr %s251, 16
      %s253 = smul.addr %s252, 4
      %s254 = scalar_lea.vmem %s6, %s253
      %s255 = smul.u32 2, %s18
      %p256 = scmp.lt.s32.totalorder %s255, 7
      %s257 = scalar_select %p256, %s255, 7
      %s258 = smul.addr %s257, 2
      %s259 = smul.addr %s258, 4
      %s260 = scalar_lea.vmem %s0, %s259
      %s261 = smul.u32 2, %s18
      %s262 = smul.u32 2, %s18
      %p263 = scmp.lt.s32.totalorder %s262, 7
      %s264 = scalar_select %p263, %s262, 7
      %s265 = smul.addr %s264, 2
      %s266 = smul.addr %s265, 8
      %s267 = scalar_lea.vmem %s5, %s266
      %s268 = smul.u32 2, %s18
      %s269 = smul.u32 2, %s18
      %p270 = scmp.lt.s32.totalorder %s269, 7
      %s271 = scalar_select %p270, %s269, 7
      %s272 = smul.addr %s271, 16
      %s273 = smul.addr %s272, 4
      %s274 = scalar_lea.vmem %s6, %s273
      %s275 = smul.u32 2, %s18
      %v277 = vld [vmem:[%s260] sm:$0xf]
      %v278 = vld [vmem:[%s260 + $0x4] sm:$0xf]
      %v279 = vld [vmem:[%s260 + $0x8] sm:$0xf]
      %v280 = vld [vmem:[%s260 + $0xc] sm:$0xf]
      %v281 = vunpack.c.l.bf16 %v277
      %v282 = vunpack.c.l.bf16 %v278
      %v283 = vunpack.c.l.bf16 %v279
      %v284 = vunpack.c.l.bf16 %v280
      %vm285 = vcmask 523264
      %v286 = vsel %vm285, %v281, 0.0
      %287 = vadd.xlane.f32.xlu0 %v286
      %v288 = vpop.xlane.xlu0 %287
      %v289 = vsel %vm285, %v282, 0.0
      %290 = vadd.xlane.f32.xlu0 %v289
      %v291 = vpop.xlane.xlu0 %290
      %v292 = vsel %vm285, %v283, 0.0
      %293 = vadd.xlane.f32.xlu0 %v292
      %v294 = vpop.xlane.xlu0 %293
      %v295 = vsel %vm285, %v284, 0.0
      %296 = vadd.xlane.f32.xlu0 %v295
      %v297 = vpop.xlane.xlu0 %296
      %v298 = vrcp.pop 64.0
      %v299 = vmul.f32 64.0, %v298
      %v300 = vsub.f32 1.0, %v299
      %v301 = vmul.f32 %v298, %v300
      %v302 = vadd.f32 %v298, %v301
      %vm303 = vweird.f32 %v298
      %v304 = vsel %vm303, %v298, %v302
      %v305 = vmul.f32 %v288, %v304
      %v306 = vmul.f32 %v291, %v304
      %v307 = vmul.f32 %v294, %v304
      %v308 = vmul.f32 %v297, %v304
      %vm309 = vcmask 7168
      %310 = vst.msk [vmem:[%s267] sm:$0xff] %vm309, %v305
      %311 = vst.msk [vmem:[%s267 + $0x8] sm:$0xff] %vm309, %v306
      %312 = vst.msk [vmem:[%s267 + $0x10] sm:$0xff] %vm309, %v307
      %313 = vst.msk [vmem:[%s267 + $0x18] sm:$0xff] %vm309, %v308
      %v314 = vld [vmem:[%s1] sm:$0xf]
      %v315 = vld [vmem:[%s1 + $0x4] sm:$0xf]
      %v316 = vld [vmem:[%s1 + $0x8] sm:$0xf]
      %v317 = vld [vmem:[%s1 + $0xc] sm:$0xf]
      %v318 = vld [vmem:[%s2] sm:$0xff]
      %v319 = vld [vmem:[%s2 + $0x8] sm:$0xff]
      %v320 = vld [vmem:[%s2 + $0x10] sm:$0xff]
      %v321 = vld [vmem:[%s2 + $0x18] sm:$0xff]
      %323 = vset.pattern.permute.xlu0 0
      %324 = vperm.xlu0 %323, %v318
      %v325 = vpop.permute.xlu0 %324
      %328 = vset.pattern.permute.xlu0 0
      %329 = vperm.xlu0 %328, %v319
      %v330 = vpop.permute.xlu0 %329
      %333 = vset.pattern.permute.xlu0 0
      %334 = vperm.xlu0 %333, %v320
      %v335 = vpop.permute.xlu0 %334
      %338 = vset.pattern.permute.xlu0 0
      %339 = vperm.xlu0 %338, %v321
      %v340 = vpop.permute.xlu0 %339
      %v346 = vunpack.c.l.b16 %v314
      %v347 = vunpack.c.l.b16 %v315
      %v348 = vunpack.c.l.b16 %v316
      %v349 = vunpack.c.l.b16 %v317
      %v350 = vpack.c.b16 %v347, %v346
      %v351 = vpack.c.b16 %v349, %v348
      %v354 = vunpack.c.l.b16 %v277
      %v355 = vunpack.c.l.b16 %v278
      %v356 = vpack.c.b16 %v355, %v354
      %vm358 = vcmask 130048
      %v360 = vsel %vm358, %v350, 0
      %v363 = vsel %vm358, %v351, 0
      %365 = vmatpush.bf16.msra.mxu0 0
      %366 = vmatpush.bf16.msra.mxu0 0
      %367 = vmatpush.bf16.msra.mxu0 0
      %368 = vmatpush.bf16.msra.mxu0 0
      %369 = vmatpush.bf16.msra.mxu0 0
      %370 = vmatpush.bf16.msra.mxu0 0
      %371 = vmatpush.bf16.msra.mxu0 0
      %372 = vmatpush.bf16.msra.mxu0 %v356
      %373 = vmatmul.bf16.gmra.mxu0 %v360
      %v374 = vpop.f32.mrf.mxu0
      %v375 = vadd.f32 %v325, %v374
      %v376 = vpop.f32.mrf.mxu0
      %v377 = vadd.f32 %v330, %v376
      %378 = vmatmul.bf16.gmra.mxu0 %v363
      %v379 = vpop.f32.mrf.mxu0
      %v380 = vadd.f32 %v335, %v379
      %v381 = vpop.f32.mrf.mxu0
      %v382 = vadd.f32 %v340, %v381
      %383 = vdwg.mxu0
      %v386 = vunpack.c.l.b16 %v279
      %v387 = vunpack.c.l.b16 %v280
      %v388 = vpack.c.b16 %v387, %v386
      %390 = vmatpush.bf16.msra.mxu0 0
      %391 = vmatpush.bf16.msra.mxu0 0
      %392 = vmatpush.bf16.msra.mxu0 0
      %393 = vmatpush.bf16.msra.mxu0 0
      %394 = vmatpush.bf16.msra.mxu0 0
      %395 = vmatpush.bf16.msra.mxu0 0
      %396 = vmatpush.bf16.msra.mxu0 0
      %397 = vmatpush.bf16.msra.mxu0 %v388
      %398 = vmatmul.bf16.gmra.mxu0 %v360
      %v399 = vpop.f32.mrf.mxu0
      %v400 = vadd.f32 %v325, %v399
      %v401 = vpop.f32.mrf.mxu0
      %v402 = vadd.f32 %v330, %v401
      %403 = vmatmul.bf16.gmra.mxu0 %v363
      %v404 = vpop.f32.mrf.mxu0
      %v405 = vadd.f32 %v335, %v404
      %v406 = vpop.f32.mrf.mxu0
      %v407 = vadd.f32 %v340, %v406
      %408 = vdwg.mxu0
      %v409 = vmax.f32 %v375, 0.0
      %v410 = vmax.f32 %v377, 0.0
      %v411 = vmax.f32 %v380, 0.0
      %v412 = vmax.f32 %v382, 0.0
      %v413 = vmax.f32 %v400, 0.0
      %v414 = vmax.f32 %v402, 0.0
      %v415 = vmax.f32 %v405, 0.0
      %v416 = vmax.f32 %v407, 0.0
      %v417 = vpack.c.bf16 %v409, %v409
      %v418 = vpack.c.bf16 %v410, %v410
      %v419 = vpack.c.bf16 %v411, %v411
      %v420 = vpack.c.bf16 %v412, %v412
      %v421 = vpack.c.bf16 %v413, %v413
      %v422 = vpack.c.bf16 %v414, %v414
      %v423 = vpack.c.bf16 %v415, %v415
      %v424 = vpack.c.bf16 %v416, %v416
      %v425 = vld [vmem:[%s3] sm:$0xf]
      %v426 = vld [vmem:[%s3 + $0x4] sm:$0xf]
      %v427 = vld [vmem:[%s3 + $0x8] sm:$0xf]
      %v428 = vld [vmem:[%s3 + $0xc] sm:$0xf]
      %v429 = vld [vmem:[%s3 + $0x10] sm:$0xf]
      %v430 = vld [vmem:[%s3 + $0x14] sm:$0xf]
      %v431 = vld [vmem:[%s3 + $0x18] sm:$0xf]
      %v432 = vld [vmem:[%s3 + $0x1c] sm:$0xf]
      %v433 = vld [vmem:[%s3 + $0x20] sm:$0xf]
      %v434 = vld [vmem:[%s3 + $0x24] sm:$0xf]
      %v435 = vld [vmem:[%s3 + $0x28] sm:$0xf]
      %v436 = vld [vmem:[%s3 + $0x2c] sm:$0xf]
      %v437 = vld [vmem:[%s3 + $0x30] sm:$0xf]
      %v438 = vld [vmem:[%s3 + $0x34] sm:$0xf]
      %v439 = vld [vmem:[%s3 + $0x38] sm:$0xf]
      %v440 = vld [vmem:[%s3 + $0x3c] sm:$0xf]
      %v441 = vld [vmem:[%s4] sm:$0xff]
      %v442 = vld [vmem:[%s4 + $0x8] sm:$0xff]
      %v443 = vld [vmem:[%s4 + $0x10] sm:$0xff]
      %v444 = vld [vmem:[%s4 + $0x18] sm:$0xff]
      %v445 = vld [vmem:[%s4 + $0x20] sm:$0xff]
      %v446 = vld [vmem:[%s4 + $0x28] sm:$0xff]
      %v447 = vld [vmem:[%s4 + $0x30] sm:$0xff]
      %v448 = vld [vmem:[%s4 + $0x38] sm:$0xff]
      %v449 = vld [vmem:[%s4 + $0x40] sm:$0xff]
      %v450 = vld [vmem:[%s4 + $0x48] sm:$0xff]
      %v451 = vld [vmem:[%s4 + $0x50] sm:$0xff]
      %v452 = vld [vmem:[%s4 + $0x58] sm:$0xff]
      %v453 = vld [vmem:[%s4 + $0x60] sm:$0xff]
      %v454 = vld [vmem:[%s4 + $0x68] sm:$0xff]
      %v455 = vld [vmem:[%s4 + $0x70] sm:$0xff]
      %v456 = vld [vmem:[%s4 + $0x78] sm:$0xff]
      %458 = vset.pattern.permute.xlu0 0
      %459 = vperm.xlu0 %458, %v441
      %v460 = vpop.permute.xlu0 %459
      %463 = vset.pattern.permute.xlu0 0
      %464 = vperm.xlu0 %463, %v442
      %v465 = vpop.permute.xlu0 %464
      %468 = vset.pattern.permute.xlu0 0
      %469 = vperm.xlu0 %468, %v443
      %v470 = vpop.permute.xlu0 %469
      %473 = vset.pattern.permute.xlu0 0
      %474 = vperm.xlu0 %473, %v444
      %v475 = vpop.permute.xlu0 %474
      %478 = vset.pattern.permute.xlu0 0
      %479 = vperm.xlu0 %478, %v445
      %v480 = vpop.permute.xlu0 %479
      %483 = vset.pattern.permute.xlu0 0
      %484 = vperm.xlu0 %483, %v446
      %v485 = vpop.permute.xlu0 %484
      %488 = vset.pattern.permute.xlu0 0
      %489 = vperm.xlu0 %488, %v447
      %v490 = vpop.permute.xlu0 %489
      %493 = vset.pattern.permute.xlu0 0
      %494 = vperm.xlu0 %493, %v448
      %v495 = vpop.permute.xlu0 %494
      %498 = vset.pattern.permute.xlu0 0
      %499 = vperm.xlu0 %498, %v449
      %v500 = vpop.permute.xlu0 %499
      %503 = vset.pattern.permute.xlu0 0
      %504 = vperm.xlu0 %503, %v450
      %v505 = vpop.permute.xlu0 %504
      %508 = vset.pattern.permute.xlu0 0
      %509 = vperm.xlu0 %508, %v451
      %v510 = vpop.permute.xlu0 %509
      %513 = vset.pattern.permute.xlu0 0
      %514 = vperm.xlu0 %513, %v452
      %v515 = vpop.permute.xlu0 %514
      %518 = vset.pattern.permute.xlu0 0
      %519 = vperm.xlu0 %518, %v453
      %v520 = vpop.permute.xlu0 %519
      %523 = vset.pattern.permute.xlu0 0
      %524 = vperm.xlu0 %523, %v454
      %v525 = vpop.permute.xlu0 %524
      %528 = vset.pattern.permute.xlu0 0
      %529 = vperm.xlu0 %528, %v455
      %v530 = vpop.permute.xlu0 %529
      %533 = vset.pattern.permute.xlu0 0
      %534 = vperm.xlu0 %533, %v456
      %v535 = vpop.permute.xlu0 %534
      %v553 = vunpack.c.l.b16 %v425
      %v554 = vunpack.c.l.b16 %v426
      %v555 = vunpack.c.l.b16 %v427
      %v556 = vunpack.c.l.b16 %v428
      %v557 = vunpack.c.l.b16 %v429
      %v558 = vunpack.c.l.b16 %v430
      %v559 = vunpack.c.l.b16 %v431
      %v560 = vunpack.c.l.b16 %v432
      %v561 = vunpack.c.l.b16 %v433
      %v562 = vunpack.c.l.b16 %v434
      %v563 = vunpack.c.l.b16 %v435
      %v564 = vunpack.c.l.b16 %v436
      %v565 = vunpack.c.l.b16 %v437
      %v566 = vunpack.c.l.b16 %v438
      %v567 = vunpack.c.l.b16 %v439
      %v568 = vunpack.c.l.b16 %v440
      %v569 = vpack.c.b16 %v554, %v553
      %v570 = vpack.c.b16 %v556, %v555
      %v571 = vpack.c.b16 %v558, %v557
      %v572 = vpack.c.b16 %v560, %v559
      %v573 = vpack.c.b16 %v562, %v561
      %v574 = vpack.c.b16 %v564, %v563
      %v575 = vpack.c.b16 %v566, %v565
      %v576 = vpack.c.b16 %v568, %v567
      %v581 = vunpack.c.l.b16 %v417
      %v582 = vunpack.c.l.b16 %v418
      %v583 = vunpack.c.l.b16 %v419
      %v584 = vunpack.c.l.b16 %v420
      %v585 = vpack.c.b16 %v582, %v581
      %v586 = vpack.c.b16 %v584, %v583
      %vm589 = vcmask 261120
      %v591 = vsel %vm589, %v569, 0
      %v594 = vsel %vm589, %v570, 0
      %v597 = vsel %vm589, %v571, 0
      %v600 = vsel %vm589, %v572, 0
      %v603 = vsel %vm589, %v573, 0
      %v606 = vsel %vm589, %v574, 0
      %v609 = vsel %vm589, %v575, 0
      %v612 = vsel %vm589, %v576, 0
      %614 = vmatpush.bf16.msra.mxu0 0
      %615 = vmatpush.bf16.msra.mxu0 0
      %616 = vmatpush.bf16.msra.mxu0 0
      %617 = vmatpush.bf16.msra.mxu0 0
      %618 = vmatpush.bf16.msra.mxu0 0
      %619 = vmatpush.bf16.msra.mxu0 0
      %620 = vmatpush.bf16.msra.mxu0 %v586
      %621 = vmatpush.bf16.msra.mxu0 %v585
      %622 = vmatmul.bf16.gmra.mxu0 %v591
      %v623 = vpop.f32.mrf.mxu0
      %v624 = vadd.f32 %v460, %v623
      %v625 = vpop.f32.mrf.mxu0
      %v626 = vadd.f32 %v465, %v625
      %627 = vmatmul.bf16.gmra.mxu0 %v594
      %v628 = vpop.f32.mrf.mxu0
      %v629 = vadd.f32 %v470, %v628
      %v630 = vpop.f32.mrf.mxu0
      %v631 = vadd.f32 %v475, %v630
      %632 = vmatmul.bf16.gmra.mxu0 %v597
      %v633 = vpop.f32.mrf.mxu0
      %v634 = vadd.f32 %v480, %v633
      %v635 = vpop.f32.mrf.mxu0
      %v636 = vadd.f32 %v485, %v635
      %637 = vmatmul.bf16.gmra.mxu0 %v600
      %v638 = vpop.f32.mrf.mxu0
      %v639 = vadd.f32 %v490, %v638
      %v640 = vpop.f32.mrf.mxu0
      %v641 = vadd.f32 %v495, %v640
      %642 = vmatmul.bf16.gmra.mxu0 %v603
      %v643 = vpop.f32.mrf.mxu0
      %v644 = vadd.f32 %v500, %v643
      %v645 = vpop.f32.mrf.mxu0
      %v646 = vadd.f32 %v505, %v645
      %647 = vmatmul.bf16.gmra.mxu0 %v606
      %v648 = vpop.f32.mrf.mxu0
      %v649 = vadd.f32 %v510, %v648
      %v650 = vpop.f32.mrf.mxu0
      %v651 = vadd.f32 %v515, %v650
      %652 = vmatmul.bf16.gmra.mxu0 %v609
      %v653 = vpop.f32.mrf.mxu0
      %v654 = vadd.f32 %v520, %v653
      %v655 = vpop.f32.mrf.mxu0
      %v656 = vadd.f32 %v525, %v655
      %657 = vmatmul.bf16.gmra.mxu0 %v612
      %v658 = vpop.f32.mrf.mxu0
      %v659 = vadd.f32 %v530, %v658
      %v660 = vpop.f32.mrf.mxu0
      %v661 = vadd.f32 %v535, %v660
      %662 = vdwg.mxu0
      %v667 = vunpack.c.l.b16 %v421
      %v668 = vunpack.c.l.b16 %v422
      %v669 = vunpack.c.l.b16 %v423
      %v670 = vunpack.c.l.b16 %v424
      %v671 = vpack.c.b16 %v668, %v667
      %v672 = vpack.c.b16 %v670, %v669
      %675 = vmatpush.bf16.msra.mxu0 0
      %676 = vmatpush.bf16.msra.mxu0 0
      %677 = vmatpush.bf16.msra.mxu0 0
      %678 = vmatpush.bf16.msra.mxu0 0
      %679 = vmatpush.bf16.msra.mxu0 0
      %680 = vmatpush.bf16.msra.mxu0 0
      %681 = vmatpush.bf16.msra.mxu0 %v672
      %682 = vmatpush.bf16.msra.mxu0 %v671
      %683 = vmatmul.bf16.gmra.mxu0 %v591
      %v684 = vpop.f32.mrf.mxu0
      %v685 = vadd.f32 %v460, %v684
      %v686 = vpop.f32.mrf.mxu0
      %v687 = vadd.f32 %v465, %v686
      %688 = vmatmul.bf16.gmra.mxu0 %v594
      %v689 = vpop.f32.mrf.mxu0
      %v690 = vadd.f32 %v470, %v689
      %v691 = vpop.f32.mrf.mxu0
      %v692 = vadd.f32 %v475, %v691
      %693 = vmatmul.bf16.gmra.mxu0 %v597
      %v694 = vpop.f32.mrf.mxu0
      %v695 = vadd.f32 %v480, %v694
      %v696 = vpop.f32.mrf.mxu0
      %v697 = vadd.f32 %v485, %v696
      %698 = vmatmul.bf16.gmra.mxu0 %v600
      %v699 = vpop.f32.mrf.mxu0
      %v700 = vadd.f32 %v490, %v699
      %v701 = vpop.f32.mrf.mxu0
      %v702 = vadd.f32 %v495, %v701
      %703 = vmatmul.bf16.gmra.mxu0 %v603
      %v704 = vpop.f32.mrf.mxu0
      %v705 = vadd.f32 %v500, %v704
      %v706 = vpop.f32.mrf.mxu0
      %v707 = vadd.f32 %v505, %v706
      %708 = vmatmul.bf16.gmra.mxu0 %v606
      %v709 = vpop.f32.mrf.mxu0
      %v710 = vadd.f32 %v510, %v709
      %v711 = vpop.f32.mrf.mxu0
      %v712 = vadd.f32 %v515, %v711
      %713 = vmatmul.bf16.gmra.mxu0 %v609
      %v714 = vpop.f32.mrf.mxu0
      %v715 = vadd.f32 %v520, %v714
      %v716 = vpop.f32.mrf.mxu0
      %v717 = vadd.f32 %v525, %v716
      %718 = vmatmul.bf16.gmra.mxu0 %v612
      %v719 = vpop.f32.mrf.mxu0
      %v720 = vadd.f32 %v530, %v719
      %v721 = vpop.f32.mrf.mxu0
      %v722 = vadd.f32 %v535, %v721
      %723 = vdwg.mxu0
      %v724 = vmax.f32 %v624, 0.0
      %v725 = vmax.f32 %v626, 0.0
      %v726 = vmax.f32 %v629, 0.0
      %v727 = vmax.f32 %v631, 0.0
      %v728 = vmax.f32 %v634, 0.0
      %v729 = vmax.f32 %v636, 0.0
      %v730 = vmax.f32 %v639, 0.0
      %v731 = vmax.f32 %v641, 0.0
      %v732 = vmax.f32 %v644, 0.0
      %v733 = vmax.f32 %v646, 0.0
      %v734 = vmax.f32 %v649, 0.0
      %v735 = vmax.f32 %v651, 0.0
      %v736 = vmax.f32 %v654, 0.0
      %v737 = vmax.f32 %v656, 0.0
      %v738 = vmax.f32 %v659, 0.0
      %v739 = vmax.f32 %v661, 0.0
      %v740 = vmax.f32 %v685, 0.0
      %v741 = vmax.f32 %v687, 0.0
      %v742 = vmax.f32 %v690, 0.0
      %v743 = vmax.f32 %v692, 0.0
      %v744 = vmax.f32 %v695, 0.0
      %v745 = vmax.f32 %v697, 0.0
      %v746 = vmax.f32 %v700, 0.0
      %v747 = vmax.f32 %v702, 0.0
      %v748 = vmax.f32 %v705, 0.0
      %v749 = vmax.f32 %v707, 0.0
      %v750 = vmax.f32 %v710, 0.0
      %v751 = vmax.f32 %v712, 0.0
      %v752 = vmax.f32 %v715, 0.0
      %v753 = vmax.f32 %v717, 0.0
      %v754 = vmax.f32 %v720, 0.0
      %v755 = vmax.f32 %v722, 0.0
      %v756 = vpack.c.bf16 %v724, %v724
      %v757 = vpack.c.bf16 %v725, %v725
      %v758 = vpack.c.bf16 %v726, %v726
      %v759 = vpack.c.bf16 %v727, %v727
      %v760 = vpack.c.bf16 %v728, %v728
      %v761 = vpack.c.bf16 %v729, %v729
      %v762 = vpack.c.bf16 %v730, %v730
      %v763 = vpack.c.bf16 %v731, %v731
      %v764 = vpack.c.bf16 %v732, %v732
      %v765 = vpack.c.bf16 %v733, %v733
      %v766 = vpack.c.bf16 %v734, %v734
      %v767 = vpack.c.bf16 %v735, %v735
      %v768 = vpack.c.bf16 %v736, %v736
      %v769 = vpack.c.bf16 %v737, %v737
      %v770 = vpack.c.bf16 %v738, %v738
      %v771 = vpack.c.bf16 %v739, %v739
      %v772 = vpack.c.bf16 %v740, %v740
      %v773 = vpack.c.bf16 %v741, %v741
      %v774 = vpack.c.bf16 %v742, %v742
      %v775 = vpack.c.bf16 %v743, %v743
      %v776 = vpack.c.bf16 %v744, %v744
      %v777 = vpack.c.bf16 %v745, %v745
      %v778 = vpack.c.bf16 %v746, %v746
      %v779 = vpack.c.bf16 %v747, %v747
      %v780 = vpack.c.bf16 %v748, %v748
      %v781 = vpack.c.bf16 %v749, %v749
      %v782 = vpack.c.bf16 %v750, %v750
      %v783 = vpack.c.bf16 %v751, %v751
      %v784 = vpack.c.bf16 %v752, %v752
      %v785 = vpack.c.bf16 %v753, %v753
      %v786 = vpack.c.bf16 %v754, %v754
      %v787 = vpack.c.bf16 %v755, %v755
      %vm788 = vcmask 519168
      %789 = vst.msk [vmem:[%s274] sm:$0xf] %vm788, %v756
      %790 = vst.msk [vmem:[%s274 + $0x4] sm:$0xf] %vm788, %v757
      %791 = vst.msk [vmem:[%s274 + $0x8] sm:$0xf] %vm788, %v758
      %792 = vst.msk [vmem:[%s274 + $0xc] sm:$0xf] %vm788, %v759
      %793 = vst.msk [vmem:[%s274 + $0x10] sm:$0xf] %vm788, %v760
      %794 = vst.msk [vmem:[%s274 + $0x14] sm:$0xf] %vm788, %v761
      %795 = vst.msk [vmem:[%s274 + $0x18] sm:$0xf] %vm788, %v762
      %796 = vst.msk [vmem:[%s274 + $0x1c] sm:$0xf] %vm788, %v763
      %797 = vst.msk [vmem:[%s274 + $0x20] sm:$0xf] %vm788, %v764
      %798 = vst.msk [vmem:[%s274 + $0x24] sm:$0xf] %vm788, %v765
      %799 = vst.msk [vmem:[%s274 + $0x28] sm:$0xf] %vm788, %v766
      %800 = vst.msk [vmem:[%s274 + $0x2c] sm:$0xf] %vm788, %v767
      %801 = vst.msk [vmem:[%s274 + $0x30] sm:$0xf] %vm788, %v768
      %802 = vst.msk [vmem:[%s274 + $0x34] sm:$0xf] %vm788, %v769
      %803 = vst.msk [vmem:[%s274 + $0x38] sm:$0xf] %vm788, %v770
      %804 = vst.msk [vmem:[%s274 + $0x3c] sm:$0xf] %vm788, %v771
      %805 = vst.msk [vmem:[%s274 + $0x40] sm:$0xf] %vm788, %v772
      %806 = vst.msk [vmem:[%s274 + $0x44] sm:$0xf] %vm788, %v773
      %807 = vst.msk [vmem:[%s274 + $0x48] sm:$0xf] %vm788, %v774
      %808 = vst.msk [vmem:[%s274 + $0x4c] sm:$0xf] %vm788, %v775
      %809 = vst.msk [vmem:[%s274 + $0x50] sm:$0xf] %vm788, %v776
      %810 = vst.msk [vmem:[%s274 + $0x54] sm:$0xf] %vm788, %v777
      %811 = vst.msk [vmem:[%s274 + $0x58] sm:$0xf] %vm788, %v778
      %812 = vst.msk [vmem:[%s274 + $0x5c] sm:$0xf] %vm788, %v779
      %813 = vst.msk [vmem:[%s274 + $0x60] sm:$0xf] %vm788, %v780
      %814 = vst.msk [vmem:[%s274 + $0x64] sm:$0xf] %vm788, %v781
      %815 = vst.msk [vmem:[%s274 + $0x68] sm:$0xf] %vm788, %v782
      %816 = vst.msk [vmem:[%s274 + $0x6c] sm:$0xf] %vm788, %v783
      %817 = vst.msk [vmem:[%s274 + $0x70] sm:$0xf] %vm788, %v784
      %818 = vst.msk [vmem:[%s274 + $0x74] sm:$0xf] %vm788, %v785
      %819 = vst.msk [vmem:[%s274 + $0x78] sm:$0xf] %vm788, %v786
      %820 = vst.msk [vmem:[%s274 + $0x7c] sm:$0xf] %vm788, %v787
      %s821 = smul.u32 2, %s18
      %p822 = scmp.lt.s32.totalorder %s821, 7
      %s823 = scalar_select %p822, %s821, 7
      %s824 = smul.addr %s823, 2
      %s825 = smul.addr %s824, 8
      %s826 = scalar_lea.vmem %s5, %s825
      %s827 = smul.u32 2, %s18
      %p828 = scmp.lt.s32.totalorder %s827, 7
      %s829 = scalar_select %p828, %s827, 7
      %s830 = smul.addr %s829, 16
      %s831 = smul.addr %s830, 4
      %s832 = scalar_lea.vmem %s6, %s831
      // Predicated region
      $region41: #{stam_forward.1} parent=39 // pred_check
        %p833 = pneg %p146
      $region42: #{stam_forward.1} parent=39 // pred_check_branch
        %835 = sbr.rel (%p833) target = $region44
      $region43: #{stam_forward.1} parent=39 // pred_region
        %s836 = smul.u32 2, %s18
      $region44: #{stam_forward.1} parent=39 // pred_fallthru
        _
      // Predicated region
      $region45: #{stam_forward.1} parent=39 // pred_check
        %p837 = pneg %p172
      $region46: #{stam_forward.1} parent=39 // pred_check_branch
        %839 = sbr.rel (%p837) target = $region48
      $region47: #{stam_forward.1} parent=39 // pred_region
        %s840 = smul.u32 2, %s18
      $region48: #{stam_forward.1} parent=39 // pred_fallthru
        _
    $region40: #{stam_forward.1} parent=5 // pred_fallthru
      _
    %p841 = scmp.le.s32.totalorder 2, %s13
    // Predicated region
    $region49: #{stam_forward.1} parent=5 // pred_check
      %p842 = pneg %p841
    $region50: #{stam_forward.1} parent=5 // pred_check_branch
      %844 = sbr.rel (%p842) target = $region52
    $region51: #{stam_forward.1} parent=5 // pred_region
      %s845 = ssub.s32 %s13, 2
      // Predicated region
      $region53: #{stam_forward.1} parent=51 // pred_check
        %p846 = pneg %p152
      $region54: #{stam_forward.1} parent=51 // pred_check_branch
        %848 = sbr.rel (%p846) target = $region56
      $region55: #{stam_forward.1} parent=51 // pred_region
        %s849 = smul.u32 2, %s19
        %p850 = scmp.lt.s32.totalorder %s849, 7
        %s851 = scalar_select %p850, %s849, 7
        %s852 = smul.addr %s851, 2
        %s853 = smul.addr %s852, 8
        %s854 = scalar_lea.vmem %s5, %s853
      $region56: #{stam_forward.1} parent=51 // pred_fallthru
        _
      // Predicated region
      $region57: #{stam_forward.1} parent=51 // pred_check
        %p855 = pneg %p178
      $region58: #{stam_forward.1} parent=51 // pred_check_branch
        %857 = sbr.rel (%p855) target = $region60
      $region59: #{stam_forward.1} parent=51 // pred_region
        %s858 = smul.u32 2, %s19
        %p859 = scmp.lt.s32.totalorder %s858, 7
        %s860 = scalar_select %p859, %s858, 7
        %s861 = smul.addr %s860, 16
        %s862 = smul.addr %s861, 4
        %s863 = scalar_lea.vmem %s6, %s862
      $region60: #{stam_forward.1} parent=51 // pred_fallthru
        _
    $region52: #{stam_forward.1} parent=5 // pred_fallthru
      _
  $region6: #{stam_forward.1} parent=0 // loop_footer
    %s17 = sadd.s32 1, %s13
  $region7: #{stam_forward.1} parent=0 // loop_footer_branch
    %12 = sbr.rel target = $region3
  $region8: #{stam_forward.1} parent=0 // loop_exit
    _

</llo_original>
